<compile_context>
chip_gen: v7x
topology: tpu7x:2x2x1
jax: 0.10.0
libtpu: 0.0.40
codegen_flags: <defaults>
</compile_context>

<pallas_src>
import jax
import jax.numpy as jnp
from jax.experimental import pallas as pl
from jax.experimental.pallas import tpu as pltpu

_TARGET_BLOCK_BYTES = 2 * 1024 * 1024   # per-buffer cap (v5e-safe when double-buffered in+out)
_SMALL_BYTES = 256 * 1024               # below this a single block (per-step overhead dominates)
_TARGET_MIN_BLOCKS = 4                  # >= 2 balanced blocks so v7x megacore can shard them


def _round_up(a, b):
    return (a + b - 1) // b * b


def _choose_2d_view(shape, n):
    """Pick (rows, cols) with rows * cols == n so the reshape is a free bitcast."""
    for cols in (512, 256, 128):
        if n % cols == 0:
            return n // cols, cols
    # Flat size not a multiple of 128: keep a suffix of the original dims as the
    # lane axis (row-major collapse -> still a free reshape) and choose the
    # suffix product with the best 128-lane utilization.
    best_cols = shape[-1] if shape else max(n, 1)
    best_util = -1.0
    prod = 1
    for d in reversed(shape):
        prod *= int(d)
        if prod > 16384:        # keep block widths sane
            break
        util = prod / float(_round_up(prod, 128))
        if util > best_util:
            best_util, best_cols = util, prod
    return n // best_cols, best_cols


def _make_lqs_kernel(thd_neg, thd_pos):
    def lqs_kernel(s_ref, x_ref, o_ref):
        s = s_ref[0]                                   # SMEM scalar step size
        y = x_ref[...].astype(jnp.float32) / s         # exact divide: bit parity with torch x / s
        y = jnp.round(jnp.clip(y, thd_neg, thd_pos))   # round-half-to-even, same as torch
        o_ref[...] = (y * s).astype(o_ref.dtype)
    return lqs_kernel


def lqs_quan_forward(x, s, *, bit=8, all_positive=True, symmetric=False):
    """Pallas implementation of LqsQuan.forward (value path)."""
    if all_positive:
        assert not symmetric, "Positive quantization cannot be symmetric"
        thd_neg, thd_pos = 0.0, float(bit - 1)
    elif symmetric:
        thd_neg, thd_pos = float(-(2 ** (bit - 1)) + 1), float(2 ** (bit - 1) - 1)
    else:
        thd_neg, thd_pos = float(-(2 ** (bit - 1))), float(2 ** (bit - 1) - 1)

    orig_shape, orig_dtype = x.shape, x.dtype
    n = x.size
    if n == 0:
        return x

    rows, cols = _choose_2d_view(orig_shape, n)
    x2 = x.reshape(rows, cols)                         # free (contiguous row-major collapse)

    itemsize = jnp.dtype(orig_dtype).itemsize
    cols_padded = _round_up(cols, 128)
    bytes_per_row = cols_padded * itemsize
    max_block_rows = max(8, ((_TARGET_BLOCK_BYTES // bytes_per_row) // 8) * 8)
    total_bytes = rows * bytes_per_row

    if rows <= 8 or (total_bytes <= _SMALL_BYTES and rows <= max_block_rows):
        block_rows = rows                              # single full-extent block, grid=(1,)
    else:
        # >= _TARGET_MIN_BLOCKS balanced blocks, capped at ~2 MiB/buffer.
        desired = _round_up(pl.cdiv(rows, _TARGET_MIN_BLOCKS), 8)
        block_rows = int(min(max_block_rows, max(8, desired)))
    grid = (pl.cdiv(rows, block_rows),)                # partial last block is elementwise-safe

    s_arr = jnp.asarray(s, dtype=jnp.float32).reshape((1,))

    out2 = pl.pallas_call(
        _make_lqs_kernel(thd_neg, thd_pos),
        out_shape=jax.ShapeDtypeStruct((rows, cols), orig_dtype),
        grid_spec=pltpu.PrefetchScalarGridSpec(
            num_scalar_prefetch=0,
            grid=grid,
            in_specs=[
                pl.BlockSpec(memory_space=pltpu.MemorySpace.SMEM),   # s (scalar, whole array)
                pl.BlockSpec((block_rows, cols), lambda i: (i, 0)),  # x row-block
            ],
            out_specs=pl.BlockSpec((block_rows, cols), lambda i: (i, 0)),
        ),
        compiler_params=pltpu.CompilerParams(
            dimension_semantics=("parallel",),   # lets Mosaic shard row blocks across TCs (v7x)
        ),
    )(s_arr, x2)

    return out2.reshape(orig_shape)                    # free reshape, no slicing


if __name__ == "__main__":
    bit = 8
    s_param = jnp.float32(0.004)  # nn.Parameter(torch.tensor(0.004))

    def ref_fn(x):
        return jnp.round(jnp.clip(x / s_param, 0.0, float(bit - 1))) * s_param

    # 1) Small NCHW input consistent with the module's usage (single tiny block).
    x = jax.random.normal(jax.random.PRNGKey(0), (2, 4, 16, 16), dtype=jnp.float32) * 0.05
    out = jax.block_until_ready(lqs_quan_forward(x, s_param, bit=bit))
    assert out.shape == x.shape and out.dtype == x.dtype
    assert jnp.allclose(out, ref_fn(x), atol=1e-6), "mismatch vs reference (small)"

    # 2) Large aligned input: exercises the balanced multi-block (grid=(4,)) path.
    x_big = jax.random.normal(jax.random.PRNGKey(1), (4, 16, 128, 128), dtype=jnp.float32) * 0.05
    out_big = jax.block_until_ready(lqs_quan_forward(x_big, s_param, bit=bit))
    assert out_big.shape == x_big.shape and out_big.dtype == x_big.dtype
    assert jnp.allclose(out_big, ref_fn(x_big), atol=1e-6), "mismatch vs reference (big)"

    # 3) Odd-sized input (flat size not a multiple of 128): exercises the pad-free
    #    suffix-collapse view, multi-block grid, and a partial last block.
    x_odd = jax.random.normal(jax.random.PRNGKey(2), (5, 7, 121, 57), dtype=jnp.float32) * 0.05
    out_odd = jax.block_until_ready(lqs_quan_forward(x_odd, s_param, bit=bit))
    assert out_odd.shape == x_odd.shape and out_odd.dtype == x_odd.dtype
    assert jnp.allclose(out_odd, ref_fn(x_odd), atol=1e-6), "mismatch vs reference (odd)"

    # TODO(synk): grad_scale / round_pass are training-time straight-through
    # estimator tricks with no effect on forward values; only the forward value
    # path is implemented here.

    print("KERNEL_OK")
</pallas_src>

<mosaic_0001>
module attributes {stable_mosaic.version = 11 : i64} {
  func.func @lqs_kernel(%arg0: i32, %arg1: memref<1xf32, #tpu.memory_space<smem>>, %arg2: memref<4x512xf32, #tpu.memory_space<vmem>>, %arg3: memref<4x512xf32, #tpu.memory_space<vmem>>) attributes {dimension_semantics = [#tpu.dimension_semantics<parallel>], iteration_bounds = array<i64: 1>, scalar_prefetch = 0 : i64, scratch_operands = 0 : i64, tpu.core_type = #tpu.core_type<tc>, window_params = [{transform_indices = @transform_0, window_bounds = array<i64: 1>}, {transform_indices = @transform_1, window_bounds = array<i64: 4, 512>}, {transform_indices = @transform_2, window_bounds = array<i64: 4, 512>}]} {
    %c0 = arith.constant 0 : index
    %0 = memref.load %arg1[%c0] : memref<1xf32, #tpu.memory_space<smem>>
    %c0_0 = arith.constant 0 : index
    %c0_1 = arith.constant 0 : index
    %1 = vector.load %arg2[%c0_0, %c0_1] : memref<4x512xf32, #tpu.memory_space<vmem>>, vector<4x512xf32>
    %2 = vector.broadcast %0 : f32 to vector<4x512xf32>
    %3 = arith.divf %1, %2 : vector<4x512xf32>
    %cst = arith.constant 0.000000e+00 : f32
    %cst_2 = arith.constant 7.000000e+00 : f32
    %4 = vector.broadcast %cst : f32 to vector<4x512xf32>
    %5 = arith.maximumf %4, %3 : vector<4x512xf32>
    %6 = vector.broadcast %cst_2 : f32 to vector<4x512xf32>
    %7 = arith.minimumf %6, %5 : vector<4x512xf32>
    %8 = math.roundeven %7 : vector<4x512xf32>
    %9 = vector.broadcast %0 : f32 to vector<4x512xf32>
    %10 = arith.mulf %8, %9 : vector<4x512xf32>
    %c0_3 = arith.constant 0 : index
    %c0_4 = arith.constant 0 : index
    %11 = vector.load %arg3[%c0_3, %c0_4] : memref<4x512xf32, #tpu.memory_space<vmem>>, vector<4x512xf32>
    tpu.vector_store %arg3[%c0_3, %c0_4], %10 {strides = array<i32>} : memref<4x512xf32, #tpu.memory_space<vmem>>, vector<4x512xf32>,
    return
  }
  func.func @transform_0(%arg0: i32) -> i32 {
    %c0_i32 = arith.constant 0 : i32
    %c0_i32_0 = arith.constant 0 : i32
    return %c0_i32 : i32
  }
  func.func @transform_1(%arg0: i32) -> (i32, i32) {
    %c0_i32 = arith.constant 0 : i32
    %c0_i32_0 = arith.constant 0 : i32
    return %arg0, %c0_i32 : i32, i32
  }
  func.func @transform_2(%arg0: i32) -> (i32, i32) {
    %c0_i32 = arith.constant 0 : i32
    %c0_i32_0 = arith.constant 0 : i32
    return %arg0, %c0_i32 : i32, i32
  }
}

</mosaic_0001>

<llo_original>
// kernel: tpu_custom_call.1
$region0: #{tpu_custom_call.1}
  #allocation0 [shape = 'u32[]', space=smem, size = 0x4, offset = 0x4, fixed_abs, tag = 'smem constant byte address 0x4 - core index']
  #allocation1 [shape = 'u32[144,128]{1,0:T(1,128)}', space=vmem, size = 0x12000, scoped, tag = 'internal scratch']
  #allocation2 [shape = 'f32[1]{0:T(128)S(6)}', space=smem, size = 0x200, scoped, tag = 'scoped memory for tpu_custom_call.1']
  %s0 = inlined_call_operand.<no memory space> [shape: f32[1], index: 0, kind: input, shape index: {}]
  %s1 = inlined_call_operand.hbm [shape: f32[4,512], index: 1, kind: input, shape index: {}]
  %s2 = inlined_call_operand.hbm [shape: f32[4,512], index: 2, kind: output, shape index: {}]
  %s3 = sld [smem:[#allocation0]]
  $region22: #{tpu_custom_call.1} parent=0
    _
  %s5 = ssub.s32 1, %s3
  %s6 = scalar_select 0, %s5, %s3
  %7 = sst [smem:[#allocation2]] %s0
  $region1: #{tpu_custom_call.1} parent=0
    #allocation3 [shape = 'u8[8192]{0}', space=vmem, size = 0x2000, scoped, tag = 'input window, operand 1, single buffered']
    #allocation4 [shape = 's32[1]{0}', space=sflag, size = 0x4, scoped, tag = 'scoped memory for tpu_custom_call.1']
    #allocation5 [shape = 's32[1]{0}', space=sflag, size = 0x4, scoped, tag = 'scoped memory for tpu_custom_call.1']
    #allocation6 [shape = 'u8[8192]{0}', space=vmem, size = 0x2000, scoped, tag = 'output window, operand 0, single buffered']
    %8 = vsyncpa [#allocation4], 0
    %9 = vsyncpa [#allocation5], 0
    // Predicated region
    $region2: #{tpu_custom_call.1} parent=1 // pred_check
      _
    $region3: #{tpu_custom_call.1} parent=1 // pred_check_branch
      %11 = sbr.rel (0) target = $region5
    $region4: #{tpu_custom_call.1} parent=1 // pred_region
      _
    $region5: #{tpu_custom_call.1} parent=1 // pred_fallthru
      _
    // Predicated region
    $region6: #{tpu_custom_call.1} parent=1 // pred_check
      _
    $region7: #{tpu_custom_call.1} parent=1 // pred_check_branch
      %13 = sbr.rel (0) target = $region9
    $region8: #{tpu_custom_call.1} parent=1 // pred_region
      %s15 = ssub.s32 256, 256
      %16 = vsyncadd [#allocation4], %s15
      %s18 = sshll.u32 [#allocation3], 4
      %s19 = int_to_ptr.vmem [resolvable:$true] %s18
      %21 = dma.hbm_to_vmem [thread:$0]  %s1, 256, %s19, [#allocation4]
    $region9: #{tpu_custom_call.1} parent=1 // pred_fallthru
      _
    // Predicated region
    $region10: #{tpu_custom_call.1} parent=1 // pred_check
      _
    $region11: #{tpu_custom_call.1} parent=1 // pred_check_branch
      %23 = sbr.rel (0) target = $region13
    $region12: #{tpu_custom_call.1} parent=1 // pred_region
      %24 = dma.done [#allocation4], 256
    $region13: #{tpu_custom_call.1} parent=1 // pred_fallthru
      _
    %s25 = sld [smem:[#allocation2]]
    %v26 = vld [vmem:[#allocation3] sm:$0xff]
    %v27 = vld [vmem:[#allocation3 + $0x8] sm:$0xff]
    %v28 = vstv %s25
    %v29 = vrcp.pop %v28
    %v30 = vmul.f32 %v26, %v29
    %v31 = vmul.f32 %v27, %v29
    %v32 = vmax.f32 %v30, 0.0
    %v33 = vmax.f32 %v31, 0.0
    %v34 = vmin.f32 %v32, 7.0
    %v35 = vmin.f32 %v33, 7.0
    %v36 = vround.ne.pseudo %v34
    %v37 = vround.ne.pseudo %v35
    %v38 = vmul.f32 %v36, %v28
    %v39 = vmul.f32 %v37, %v28
    %40 = vst [vmem:[#allocation6] sm:$0xff] %v38
    %41 = vst [vmem:[#allocation6 + $0x8] sm:$0xff] %v39
    // Predicated region
    $region14: #{tpu_custom_call.1} parent=1 // pred_check
      _
    $region15: #{tpu_custom_call.1} parent=1 // pred_check_branch
      %43 = sbr.rel (0) target = $region17
    $region16: #{tpu_custom_call.1} parent=1 // pred_region
      %s45 = ssub.s32 256, 256
      %46 = vsyncadd [#allocation5], %s45
      %s48 = sshll.u32 [#allocation6], 4
      %s49 = int_to_ptr.vmem [resolvable:$true] %s48
      %51 = dma.vmem_to_hbm [thread:$0]  %s49, 256, %s2, [#allocation5]
    $region17: #{tpu_custom_call.1} parent=1 // pred_fallthru
      _
    // Predicated region
    $region18: #{tpu_custom_call.1} parent=1 // pred_check
      _
    $region19: #{tpu_custom_call.1} parent=1 // pred_check_branch
      %53 = sbr.rel (0) target = $region21
    $region20: #{tpu_custom_call.1} parent=1 // pred_region
      %54 = dma.done [#allocation5], 256
    $region21: #{tpu_custom_call.1} parent=1 // pred_fallthru
      _
    %55 = vsyncpa [#allocation4], 1
    %56 = vsyncpa [#allocation5], 1

</llo_original>
